<compile_context>
chip_gen: v5e
topology: v5e:2x2
jax: 0.10.0
libtpu: 0.0.40
codegen_flags: <defaults>
</compile_context>

<pallas_src>
import jax
import jax.numpy as jnp
from jax.experimental import pallas as pl
from jax.experimental.pallas import tpu as pltpu


def separable_conv2d(x_nchw, w_dw_torch, w_pw_torch):
    """
    Fused SeparableConv2d forward (stride=1, padding=0, bias=False — the module defaults).

    x_nchw:     (N, Cin, H, W)     PyTorch NCHW input
    w_dw_torch: (Cin, 1, KH, KW)   depthwise weight (groups=Cin, bias=False)
    w_pw_torch: (Cout, Cin, 1, 1)  pointwise 1x1 weight (bias=False)
    returns:    (N, Cout, H-KH+1, W-KW+1) in NCHW
    """
    N, C, H, W = x_nchw.shape
    KH, KW = int(w_dw_torch.shape[2]), int(w_dw_torch.shape[3])
    Cout = int(w_pw_torch.shape[0])
    Ho, Wo = H - KH + 1, W - KW + 1
    HW = H * W
    assert Ho > 0 and Wo > 0, "assumes stride=1, padding=0 (VALID) with K <= H, W"

    L = (Ho - 1) * W + Wo                    # valid flat output length per image (222 here)
    # Static bounds check: the largest in-kernel slice start is (KH-1)*W + (KW-1); it must stay
    # inside the H*W lane extent of x (VMEM refs have NO runtime bounds check).
    assert (KH - 1) * W + (KW - 1) + L <= HW, "im2col shifted slice would read out of bounds"

    CP = ((C + 7) // 8) * 8                  # channel block padded to a full sublane tile (8)
    KP = KH * KW * CP                        # padded im2col contraction size (72 here)
    Lp = ((L + 127) // 128) * 128            # per-image lane extent, 128-aligned (256 here)
    NLp = N * Lp                             # output / patch lane extent (512 here)

    dtype = x_nchw.dtype

    # ---------------- wrapper-side glue (cheap reshape / pad / slice only) ----------------
    # Pad channels to CP and flatten spatial into the lane dimension (NCHW order preserved).
    x_flat = jnp.pad(x_nchw, ((0, 0), (0, CP - C), (0, 0), (0, 0))).reshape(N, CP, HW)

    # Fuse the two linear stages:
    #   out[co] = sum_{ci,kh,kw} (pw[co,ci] * dw[ci,kh,kw]) * x[ci, . + kh, . + kw]
    dw = w_dw_torch[:, 0]                                                 # (Cin, KH, KW)
    pw = w_pw_torch[:, :, 0, 0]                                           # (Cout, Cin)
    w_fused = pw[:, None, None, :] * jnp.transpose(dw, (1, 2, 0))[None]   # (Cout, KH, KW, Cin)
    w_fused = jnp.pad(w_fused, ((0, 0), (0, 0), (0, 0), (0, CP - C)))     # zero rows for pad ch
    w_mat = w_fused.reshape(Cout, KP).astype(dtype)                       # k = tap*CP + ci

    def kernel(x_ref, w_ref, o_ref, patch_ref):
        # x_ref:     (N, CP, H*W)   NCHW input (channels zero-padded), flat spatial in lanes
        # w_ref:     (Cout, KP)     fused depthwise*pointwise weights (zero-padded K rows)
        # o_ref:     (Cout, N*Lp)   flat output, image n in columns [n*Lp, n*Lp+L)
        # patch_ref: (KP, N*Lp)     VMEM scratch: batched im2col patch matrix
        w = w_ref[...]                                   # hoisted single weight load

        # Deterministic zeros in the slack columns (cost: a few full-tile stores).
        patch_ref[...] = jnp.zeros_like(patch_ref)

        # Build the im2col matrix with lane-shifted copies; every store covers full 8-sublane
        # tiles (CP = 8) thanks to the channel padding:
        #   patch[tap*CP + ci, n*Lp + p] = x[n, ci, p + kh*W + kw]
        for n in range(N):                               # N is small and static
            col0 = n * Lp
            for kh in range(KH):
                for kw in range(KW):
                    tap = kh * KW + kw
                    shift = kh * W + kw
                    patch_ref[tap * CP:(tap + 1) * CP, col0:col0 + L] = (
                        x_ref[n, :, shift:shift + L])

        # One MXU matmul for the whole batch: (Cout, KP) @ (KP, N*Lp) -> lane-dense store.
        o_ref[...] = jnp.dot(
            w, patch_ref[...], preferred_element_type=jnp.float32
        ).astype(o_ref.dtype)

    cost = pl.CostEstimate(
        flops=2 * Cout * KP * NLp,
        transcendentals=0,
        bytes_accessed=(x_flat.size + w_mat.size + Cout * NLp) * x_flat.dtype.itemsize,
    )

    out_flat = pl.pallas_call(
        kernel,
        out_shape=jax.ShapeDtypeStruct((Cout, NLp), dtype),
        grid=(1,),                      # whole (small) batch in one step; grid is a serial loop
        in_specs=[
            pl.BlockSpec((N, CP, HW), lambda i: (0, 0, 0)),
            pl.BlockSpec((Cout, KP), lambda i: (0, 0)),
        ],
        out_specs=pl.BlockSpec((Cout, NLp), lambda i: (0, 0)),
        scratch_shapes=[pltpu.VMEM((KP, NLp), dtype)],
        compiler_params=pltpu.CompilerParams(dimension_semantics=("arbitrary",)),
        cost_estimate=cost,
    )(x_flat, w_mat)

    # Undo the flat-spatial layout (tiny wrapper-side ops on an (Cout, N, Lp) array):
    out_ncl = jnp.transpose(out_flat.reshape(Cout, N, Lp), (1, 0, 2))     # (N, Cout, Lp)
    out_valid = out_ncl[:, :, :L]                                         # drop slack columns
    out_full = jnp.pad(out_valid, ((0, 0), (0, 0), (0, Ho * W - L)))      # pad last row's tail
    return out_full.reshape(N, Cout, Ho, W)[:, :, :, :Wo]                 # (N, Cout, Ho, Wo)


def _reference(x_nchw, w_dw_torch, w_pw_torch):
    C = x_nchw.shape[1]
    dw_out = jax.lax.conv_general_dilated(
        x_nchw, w_dw_torch, window_strides=(1, 1), padding="VALID",
        feature_group_count=C, dimension_numbers=("NCHW", "OIHW", "NCHW"))
    return jax.lax.conv_general_dilated(
        dw_out, w_pw_torch, window_strides=(1, 1), padding="VALID",
        dimension_numbers=("NCHW", "OIHW", "NCHW"))


if __name__ == "__main__":
    # Small shapes consistent with the module: batch=2, in_channels=4, spatial=16,
    # out_channels=8, kernel_size=3, stride=1, padding=0.
    N, Cin, H, W = 2, 4, 16, 16
    Cout, K = 8, 3

    key = jax.random.PRNGKey(0)
    kx, kd, kp = jax.random.split(key, 3)
    x = jax.random.normal(kx, (N, Cin, H, W), dtype=jnp.float32)
    w_dw = jax.random.normal(kd, (Cin, 1, K, K), dtype=jnp.float32) * 0.1
    w_pw = jax.random.normal(kp, (Cout, Cin, 1, 1), dtype=jnp.float32) * 0.1

    out = jax.jit(separable_conv2d)(x, w_dw, w_pw)
    out = jax.block_until_ready(out)

    ref = _reference(x, w_dw, w_pw)
    assert out.shape == (N, Cout, H - K + 1, W - K + 1), out.shape
    assert jnp.allclose(out, ref, atol=1e-5, rtol=1e-5), "mismatch vs XLA reference"

    print("KERNEL_OK")
</pallas_src>

<mosaic_0001>
module attributes {stable_mosaic.version = 11 : i64} {
  func.func @kernel(%arg0: i32, %arg1: memref<2x8x256xf32, #tpu.memory_space<vmem>>, %arg2: memref<8x72xf32, #tpu.memory_space<vmem>>, %arg3: memref<8x512xf32, #tpu.memory_space<vmem>>, %arg4: memref<72x512xf32, #tpu.memory_space<vmem>>) attributes {dimension_semantics = [#tpu.dimension_semantics<arbitrary>], iteration_bounds = array<i64: 1>, scalar_prefetch = 0 : i64, scratch_operands = 1 : i64, tpu.core_type = #tpu.core_type<tc>, window_params = [{pipeline_mode = #tpu.pipeline_mode<synchronous>, transform_indices = @transform_0, window_bounds = array<i64: 2, 8, 256>}, {pipeline_mode = #tpu.pipeline_mode<synchronous>, transform_indices = @transform_1, window_bounds = array<i64: 8, 72>}, {pipeline_mode = #tpu.pipeline_mode<synchronous>, transform_indices = @transform_2, window_bounds = array<i64: 8, 512>}]} {
    %c0 = arith.constant 0 : index
    %c0_0 = arith.constant 0 : index
    %0 = vector.load %arg2[%c0, %c0_0] : memref<8x72xf32, #tpu.memory_space<vmem>>, vector<8x72xf32>
    %cst = arith.constant 0.000000e+00 : f32
    %1 = vector.broadcast %cst : f32 to vector<72x512xf32>
    %c0_1 = arith.constant 0 : index
    %c0_2 = arith.constant 0 : index
    %2 = vector.load %arg4[%c0_1, %c0_2] : memref<72x512xf32, #tpu.memory_space<vmem>>, vector<72x512xf32>
    tpu.vector_store %arg4[%c0_1, %c0_2], %1 {strides = array<i32>} : memref<72x512xf32, #tpu.memory_space<vmem>>, vector<72x512xf32>,
    %c0_3 = arith.constant 0 : index
    %c0_4 = arith.constant 0 : index
    %c0_5 = arith.constant 0 : index
    %3 = vector.load %arg1[%c0_3, %c0_4, %c0_5] : memref<2x8x256xf32, #tpu.memory_space<vmem>>, vector<1x8x222xf32>
    %4 = vector.shape_cast %3 : vector<1x8x222xf32> to vector<8x222xf32>
    %c0_6 = arith.constant 0 : index
    %c0_7 = arith.constant 0 : index
    %5 = vector.load %arg4[%c0_6, %c0_7] : memref<72x512xf32, #tpu.memory_space<vmem>>, vector<8x222xf32>
    tpu.vector_store %arg4[%c0_6, %c0_7], %4 {strides = array<i32>} : memref<72x512xf32, #tpu.memory_space<vmem>>, vector<8x222xf32>,
    %c0_8 = arith.constant 0 : index
    %c0_9 = arith.constant 0 : index
    %c1 = arith.constant 1 : index
    %6 = vector.load %arg1[%c0_8, %c0_9, %c1] : memref<2x8x256xf32, #tpu.memory_space<vmem>>, vector<1x8x222xf32>
    %7 = vector.shape_cast %6 : vector<1x8x222xf32> to vector<8x222xf32>
    %c8 = arith.constant 8 : index
    %c0_10 = arith.constant 0 : index
    %8 = vector.load %arg4[%c8, %c0_10] : memref<72x512xf32, #tpu.memory_space<vmem>>, vector<8x222xf32>
    tpu.vector_store %arg4[%c8, %c0_10], %7 {strides = array<i32>} : memref<72x512xf32, #tpu.memory_space<vmem>>, vector<8x222xf32>,
    %c0_11 = arith.constant 0 : index
    %c0_12 = arith.constant 0 : index
    %c2 = arith.constant 2 : index
    %9 = vector.load %arg1[%c0_11, %c0_12, %c2] : memref<2x8x256xf32, #tpu.memory_space<vmem>>, vector<1x8x222xf32>
    %10 = vector.shape_cast %9 : vector<1x8x222xf32> to vector<8x222xf32>
    %c16 = arith.constant 16 : index
    %c0_13 = arith.constant 0 : index
    %11 = vector.load %arg4[%c16, %c0_13] : memref<72x512xf32, #tpu.memory_space<vmem>>, vector<8x222xf32>
    tpu.vector_store %arg4[%c16, %c0_13], %10 {strides = array<i32>} : memref<72x512xf32, #tpu.memory_space<vmem>>, vector<8x222xf32>,
    %c0_14 = arith.constant 0 : index
    %c0_15 = arith.constant 0 : index
    %c16_16 = arith.constant 16 : index
    %12 = vector.load %arg1[%c0_14, %c0_15, %c16_16] : memref<2x8x256xf32, #tpu.memory_space<vmem>>, vector<1x8x222xf32>
    %13 = vector.shape_cast %12 : vector<1x8x222xf32> to vector<8x222xf32>
    %c24 = arith.constant 24 : index
    %c0_17 = arith.constant 0 : index
    %14 = vector.load %arg4[%c24, %c0_17] : memref<72x512xf32, #tpu.memory_space<vmem>>, vector<8x222xf32>
    tpu.vector_store %arg4[%c24, %c0_17], %13 {strides = array<i32>} : memref<72x512xf32, #tpu.memory_space<vmem>>, vector<8x222xf32>,
    %c0_18 = arith.constant 0 : index
    %c0_19 = arith.constant 0 : index
    %c17 = arith.constant 17 : index
    %15 = vector.load %arg1[%c0_18, %c0_19, %c17] : memref<2x8x256xf32, #tpu.memory_space<vmem>>, vector<1x8x222xf32>
    %16 = vector.shape_cast %15 : vector<1x8x222xf32> to vector<8x222xf32>
    %c32 = arith.constant 32 : index
    %c0_20 = arith.constant 0 : index
    %17 = vector.load %arg4[%c32, %c0_20] : memref<72x512xf32, #tpu.memory_space<vmem>>, vector<8x222xf32>
    tpu.vector_store %arg4[%c32, %c0_20], %16 {strides = array<i32>} : memref<72x512xf32, #tpu.memory_space<vmem>>, vector<8x222xf32>,
    %c0_21 = arith.constant 0 : index
    %c0_22 = arith.constant 0 : index
    %c18 = arith.constant 18 : index
    %18 = vector.load %arg1[%c0_21, %c0_22, %c18] : memref<2x8x256xf32, #tpu.memory_space<vmem>>, vector<1x8x222xf32>
    %19 = vector.shape_cast %18 : vector<1x8x222xf32> to vector<8x222xf32>
    %c40 = arith.constant 40 : index
    %c0_23 = arith.constant 0 : index
    %20 = vector.load %arg4[%c40, %c0_23] : memref<72x512xf32, #tpu.memory_space<vmem>>, vector<8x222xf32>
    tpu.vector_store %arg4[%c40, %c0_23], %19 {strides = array<i32>} : memref<72x512xf32, #tpu.memory_space<vmem>>, vector<8x222xf32>,
    %c0_24 = arith.constant 0 : index
    %c0_25 = arith.constant 0 : index
    %c32_26 = arith.constant 32 : index
    %21 = vector.load %arg1[%c0_24, %c0_25, %c32_26] : memref<2x8x256xf32, #tpu.memory_space<vmem>>, vector<1x8x222xf32>
    %22 = vector.shape_cast %21 : vector<1x8x222xf32> to vector<8x222xf32>
    %c48 = arith.constant 48 : index
    %c0_27 = arith.constant 0 : index
    %23 = vector.load %arg4[%c48, %c0_27] : memref<72x512xf32, #tpu.memory_space<vmem>>, vector<8x222xf32>
    tpu.vector_store %arg4[%c48, %c0_27], %22 {strides = array<i32>} : memref<72x512xf32, #tpu.memory_space<vmem>>, vector<8x222xf32>,
    %c0_28 = arith.constant 0 : index
    %c0_29 = arith.constant 0 : index
    %c33 = arith.constant 33 : index
    %24 = vector.load %arg1[%c0_28, %c0_29, %c33] : memref<2x8x256xf32, #tpu.memory_space<vmem>>, vector<1x8x222xf32>
    %25 = vector.shape_cast %24 : vector<1x8x222xf32> to vector<8x222xf32>
    %c56 = arith.constant 56 : index
    %c0_30 = arith.constant 0 : index
    %26 = vector.load %arg4[%c56, %c0_30] : memref<72x512xf32, #tpu.memory_space<vmem>>, vector<8x222xf32>
    tpu.vector_store %arg4[%c56, %c0_30], %25 {strides = array<i32>} : memref<72x512xf32, #tpu.memory_space<vmem>>, vector<8x222xf32>,
    %c0_31 = arith.constant 0 : index
    %c0_32 = arith.constant 0 : index
    %c34 = arith.constant 34 : index
    %27 = vector.load %arg1[%c0_31, %c0_32, %c34] : memref<2x8x256xf32, #tpu.memory_space<vmem>>, vector<1x8x222xf32>
    %28 = vector.shape_cast %27 : vector<1x8x222xf32> to vector<8x222xf32>
    %c64 = arith.constant 64 : index
    %c0_33 = arith.constant 0 : index
    %29 = vector.load %arg4[%c64, %c0_33] : memref<72x512xf32, #tpu.memory_space<vmem>>, vector<8x222xf32>
    tpu.vector_store %arg4[%c64, %c0_33], %28 {strides = array<i32>} : memref<72x512xf32, #tpu.memory_space<vmem>>, vector<8x222xf32>,
    %c1_34 = arith.constant 1 : index
    %c0_35 = arith.constant 0 : index
    %c0_36 = arith.constant 0 : index
    %30 = vector.load %arg1[%c1_34, %c0_35, %c0_36] : memref<2x8x256xf32, #tpu.memory_space<vmem>>, vector<1x8x222xf32>
    %31 = vector.shape_cast %30 : vector<1x8x222xf32> to vector<8x222xf32>
    %c0_37 = arith.constant 0 : index
    %c256 = arith.constant 256 : index
    %32 = vector.load %arg4[%c0_37, %c256] : memref<72x512xf32, #tpu.memory_space<vmem>>, vector<8x222xf32>
    tpu.vector_store %arg4[%c0_37, %c256], %31 {strides = array<i32>} : memref<72x512xf32, #tpu.memory_space<vmem>>, vector<8x222xf32>,
    %c1_38 = arith.constant 1 : index
    %c0_39 = arith.constant 0 : index
    %c1_40 = arith.constant 1 : index
    %33 = vector.load %arg1[%c1_38, %c0_39, %c1_40] : memref<2x8x256xf32, #tpu.memory_space<vmem>>, vector<1x8x222xf32>
    %34 = vector.shape_cast %33 : vector<1x8x222xf32> to vector<8x222xf32>
    %c8_41 = arith.constant 8 : index
    %c256_42 = arith.constant 256 : index
    %35 = vector.load %arg4[%c8_41, %c256_42] : memref<72x512xf32, #tpu.memory_space<vmem>>, vector<8x222xf32>
    tpu.vector_store %arg4[%c8_41, %c256_42], %34 {strides = array<i32>} : memref<72x512xf32, #tpu.memory_space<vmem>>, vector<8x222xf32>,
    %c1_43 = arith.constant 1 : index
    %c0_44 = arith.constant 0 : index
    %c2_45 = arith.constant 2 : index
    %36 = vector.load %arg1[%c1_43, %c0_44, %c2_45] : memref<2x8x256xf32, #tpu.memory_space<vmem>>, vector<1x8x222xf32>
    %37 = vector.shape_cast %36 : vector<1x8x222xf32> to vector<8x222xf32>
    %c16_46 = arith.constant 16 : index
    %c256_47 = arith.constant 256 : index
    %38 = vector.load %arg4[%c16_46, %c256_47] : memref<72x512xf32, #tpu.memory_space<vmem>>, vector<8x222xf32>
    tpu.vector_store %arg4[%c16_46, %c256_47], %37 {strides = array<i32>} : memref<72x512xf32, #tpu.memory_space<vmem>>, vector<8x222xf32>,
    %c1_48 = arith.constant 1 : index
    %c0_49 = arith.constant 0 : index
    %c16_50 = arith.constant 16 : index
    %39 = vector.load %arg1[%c1_48, %c0_49, %c16_50] : memref<2x8x256xf32, #tpu.memory_space<vmem>>, vector<1x8x222xf32>
    %40 = vector.shape_cast %39 : vector<1x8x222xf32> to vector<8x222xf32>
    %c24_51 = arith.constant 24 : index
    %c256_52 = arith.constant 256 : index
    %41 = vector.load %arg4[%c24_51, %c256_52] : memref<72x512xf32, #tpu.memory_space<vmem>>, vector<8x222xf32>
    tpu.vector_store %arg4[%c24_51, %c256_52], %40 {strides = array<i32>} : memref<72x512xf32, #tpu.memory_space<vmem>>, vector<8x222xf32>,
    %c1_53 = arith.constant 1 : index
    %c0_54 = arith.constant 0 : index
    %c17_55 = arith.constant 17 : index
    %42 = vector.load %arg1[%c1_53, %c0_54, %c17_55] : memref<2x8x256xf32, #tpu.memory_space<vmem>>, vector<1x8x222xf32>
    %43 = vector.shape_cast %42 : vector<1x8x222xf32> to vector<8x222xf32>
    %c32_56 = arith.constant 32 : index
    %c256_57 = arith.constant 256 : index
    %44 = vector.load %arg4[%c32_56, %c256_57] : memref<72x512xf32, #tpu.memory_space<vmem>>, vector<8x222xf32>
    tpu.vector_store %arg4[%c32_56, %c256_57], %43 {strides = array<i32>} : memref<72x512xf32, #tpu.memory_space<vmem>>, vector<8x222xf32>,
    %c1_58 = arith.constant 1 : index
    %c0_59 = arith.constant 0 : index
    %c18_60 = arith.constant 18 : index
    %45 = vector.load %arg1[%c1_58, %c0_59, %c18_60] : memref<2x8x256xf32, #tpu.memory_space<vmem>>, vector<1x8x222xf32>
    %46 = vector.shape_cast %45 : vector<1x8x222xf32> to vector<8x222xf32>
    %c40_61 = arith.constant 40 : index
    %c256_62 = arith.constant 256 : index
    %47 = vector.load %arg4[%c40_61, %c256_62] : memref<72x512xf32, #tpu.memory_space<vmem>>, vector<8x222xf32>
    tpu.vector_store %arg4[%c40_61, %c256_62], %46 {strides = array<i32>} : memref<72x512xf32, #tpu.memory_space<vmem>>, vector<8x222xf32>,
    %c1_63 = arith.constant 1 : index
    %c0_64 = arith.constant 0 : index
    %c32_65 = arith.constant 32 : index
    %48 = vector.load %arg1[%c1_63, %c0_64, %c32_65] : memref<2x8x256xf32, #tpu.memory_space<vmem>>, vector<1x8x222xf32>
    %49 = vector.shape_cast %48 : vector<1x8x222xf32> to vector<8x222xf32>
    %c48_66 = arith.constant 48 : index
    %c256_67 = arith.constant 256 : index
    %50 = vector.load %arg4[%c48_66, %c256_67] : memref<72x512xf32, #tpu.memory_space<vmem>>, vector<8x222xf32>
    tpu.vector_store %arg4[%c48_66, %c256_67], %49 {strides = array<i32>} : memref<72x512xf32, #tpu.memory_space<vmem>>, vector<8x222xf32>,
    %c1_68 = arith.constant 1 : index
    %c0_69 = arith.constant 0 : index
    %c33_70 = arith.constant 33 : index
    %51 = vector.load %arg1[%c1_68, %c0_69, %c33_70] : memref<2x8x256xf32, #tpu.memory_space<vmem>>, vector<1x8x222xf32>
    %52 = vector.shape_cast %51 : vector<1x8x222xf32> to vector<8x222xf32>
    %c56_71 = arith.constant 56 : index
    %c256_72 = arith.constant 256 : index
    %53 = vector.load %arg4[%c56_71, %c256_72] : memref<72x512xf32, #tpu.memory_space<vmem>>, vector<8x222xf32>
    tpu.vector_store %arg4[%c56_71, %c256_72], %52 {strides = array<i32>} : memref<72x512xf32, #tpu.memory_space<vmem>>, vector<8x222xf32>,
    %c1_73 = arith.constant 1 : index
    %c0_74 = arith.constant 0 : index
    %c34_75 = arith.constant 34 : index
    %54 = vector.load %arg1[%c1_73, %c0_74, %c34_75] : memref<2x8x256xf32, #tpu.memory_space<vmem>>, vector<1x8x222xf32>
    %55 = vector.shape_cast %54 : vector<1x8x222xf32> to vector<8x222xf32>
    %c64_76 = arith.constant 64 : index
    %c256_77 = arith.constant 256 : index
    %56 = vector.load %arg4[%c64_76, %c256_77] : memref<72x512xf32, #tpu.memory_space<vmem>>, vector<8x222xf32>
    tpu.vector_store %arg4[%c64_76, %c256_77], %55 {strides = array<i32>} : memref<72x512xf32, #tpu.memory_space<vmem>>, vector<8x222xf32>,
    %c0_78 = arith.constant 0 : index
    %c0_79 = arith.constant 0 : index
    %57 = vector.load %arg4[%c0_78, %c0_79] : memref<72x512xf32, #tpu.memory_space<vmem>>, vector<72x512xf32>
    %cst_80 = arith.constant dense<0.000000e+00> : vector<8x512xf32>
    %58 = tpu.matmul %0, %57, %cst_80 {dimension_numbers = #tpu.dot_dimension_numbers<[1], [0], [0], [1], [0, 0, 1, 1], [], []>} : vector<8x72xf32>, vector<72x512xf32>, vector<8x512xf32> -> vector<8x512xf32>
    %c0_81 = arith.constant 0 : index
    %c0_82 = arith.constant 0 : index
    %59 = vector.load %arg3[%c0_81, %c0_82] : memref<8x512xf32, #tpu.memory_space<vmem>>, vector<8x512xf32>
    tpu.vector_store %arg3[%c0_81, %c0_82], %58 {strides = array<i32>} : memref<8x512xf32, #tpu.memory_space<vmem>>, vector<8x512xf32>,
    return
  }
  func.func @transform_0(%arg0: i32) -> (i32, i32, i32) {
    %c0_i32 = arith.constant 0 : i32
    %c0_i32_0 = arith.constant 0 : i32
    %c0_i32_1 = arith.constant 0 : i32
    %c0_i32_2 = arith.constant 0 : i32
    return %c0_i32, %c0_i32_0, %c0_i32_1 : i32, i32, i32
  }
  func.func @transform_1(%arg0: i32) -> (i32, i32) {
    %c0_i32 = arith.constant 0 : i32
    %c0_i32_0 = arith.constant 0 : i32
    %c0_i32_1 = arith.constant 0 : i32
    return %c0_i32, %c0_i32_0 : i32, i32
  }
  func.func @transform_2(%arg0: i32) -> (i32, i32) {
    %c0_i32 = arith.constant 0 : i32
    %c0_i32_0 = arith.constant 0 : i32
    %c0_i32_1 = arith.constant 0 : i32
    return %c0_i32, %c0_i32_0 : i32, i32
  }
}

</mosaic_0001>

<llo_original>
// kernel: separable_conv2d.1
$region0: #{separable_conv2d.1}
  #allocation0 [shape = 'u32[]', space=smem, size = 0x4, offset = 0x4, fixed_abs, tag = 'smem constant byte address 0x4 - core index']
  #allocation1 [shape = 'u32[72,128]{1,0:T(1,128)}', space=vmem, size = 0x9000, scoped, tag = 'internal scratch']
  #allocation2 [shape = 'f32[72,512]{1,0:T(8,128)}', space=vmem, size = 0x24000, scoped, tag = 'scratch operand']
  %s0 = inlined_call_operand.vmem [shape: f32[2,8,256], index: 0, kind: input, shape index: {}]
  %s1 = inlined_call_operand.vmem [shape: f32[8,72], index: 1, kind: input, shape index: {}]
  %s2 = inlined_call_operand.vmem [shape: f32[8,512], index: 2, kind: output, shape index: {}]
  %s3 = sld [smem:[#allocation0]]
  $region18: #{separable_conv2d.1} parent=0
    _
  %s5 = ssub.s32 1, %s3
  %s6 = scalar_select 0, %s5, %s3
  // Predicated region
  $region2: #{separable_conv2d.1} parent=0 // pred_check
    _
  $region3: #{separable_conv2d.1} parent=0 // pred_check_branch
    %8 = sbr.rel (0) target = $region5
  $region4: #{separable_conv2d.1} parent=0 // pred_region
    _
  $region5: #{separable_conv2d.1} parent=0 // pred_fallthru
    _
  // Predicated region
  $region6: #{separable_conv2d.1} parent=0 // pred_check
    _
  $region7: #{separable_conv2d.1} parent=0 // pred_check_branch
    %10 = sbr.rel (0) target = $region9
  $region8: #{separable_conv2d.1} parent=0 // pred_region
    _
  $region9: #{separable_conv2d.1} parent=0 // pred_fallthru
    _
  %v11 = vld [vmem:[%s1] sm:$0xff]
  %12 = vst [vmem:[#allocation2] sm:$0xff] 0.0
  %13 = vst [vmem:[#allocation2 + $0x8] sm:$0xff] 0.0
  %14 = vst [vmem:[#allocation2 + $0x10] sm:$0xff] 0.0
  %15 = vst [vmem:[#allocation2 + $0x18] sm:$0xff] 0.0
  %16 = vst [vmem:[#allocation2 + $0x20] sm:$0xff] 0.0
  %17 = vst [vmem:[#allocation2 + $0x28] sm:$0xff] 0.0
  %18 = vst [vmem:[#allocation2 + $0x30] sm:$0xff] 0.0
  %19 = vst [vmem:[#allocation2 + $0x38] sm:$0xff] 0.0
  %20 = vst [vmem:[#allocation2 + $0x40] sm:$0xff] 0.0
  %21 = vst [vmem:[#allocation2 + $0x48] sm:$0xff] 0.0
  %22 = vst [vmem:[#allocation2 + $0x50] sm:$0xff] 0.0
  %23 = vst [vmem:[#allocation2 + $0x58] sm:$0xff] 0.0
  %24 = vst [vmem:[#allocation2 + $0x60] sm:$0xff] 0.0
  %25 = vst [vmem:[#allocation2 + $0x68] sm:$0xff] 0.0
  %26 = vst [vmem:[#allocation2 + $0x70] sm:$0xff] 0.0
  %27 = vst [vmem:[#allocation2 + $0x78] sm:$0xff] 0.0
  %28 = vst [vmem:[#allocation2 + $0x80] sm:$0xff] 0.0
  %29 = vst [vmem:[#allocation2 + $0x88] sm:$0xff] 0.0
  %30 = vst [vmem:[#allocation2 + $0x90] sm:$0xff] 0.0
  %31 = vst [vmem:[#allocation2 + $0x98] sm:$0xff] 0.0
  %32 = vst [vmem:[#allocation2 + $0xa0] sm:$0xff] 0.0
  %33 = vst [vmem:[#allocation2 + $0xa8] sm:$0xff] 0.0
  %34 = vst [vmem:[#allocation2 + $0xb0] sm:$0xff] 0.0
  %35 = vst [vmem:[#allocation2 + $0xb8] sm:$0xff] 0.0
  %36 = vst [vmem:[#allocation2 + $0xc0] sm:$0xff] 0.0
  %37 = vst [vmem:[#allocation2 + $0xc8] sm:$0xff] 0.0
  %38 = vst [vmem:[#allocation2 + $0xd0] sm:$0xff] 0.0
  %39 = vst [vmem:[#allocation2 + $0xd8] sm:$0xff] 0.0
  %40 = vst [vmem:[#allocation2 + $0xe0] sm:$0xff] 0.0
  %41 = vst [vmem:[#allocation2 + $0xe8] sm:$0xff] 0.0
  %42 = vst [vmem:[#allocation2 + $0xf0] sm:$0xff] 0.0
  %43 = vst [vmem:[#allocation2 + $0xf8] sm:$0xff] 0.0
  %44 = vst [vmem:[#allocation2 + $0x100] sm:$0xff] 0.0
  %45 = vst [vmem:[#allocation2 + $0x108] sm:$0xff] 0.0
  %46 = vst [vmem:[#allocation2 + $0x110] sm:$0xff] 0.0
  %47 = vst [vmem:[#allocation2 + $0x118] sm:$0xff] 0.0
  %v48 = vld [vmem:[%s0] sm:$0xff]
  %v49 = vld [vmem:[%s0 + $0x8] sm:$0xff]
  %50 = vst [vmem:[#allocation2] sm:$0xff] %v48
  %vm51 = vcmask 769024
  %52 = vst.msk [vmem:[#allocation2 + $0x8] sm:$0xff] %vm51, %v49
  %v53 = vld [vmem:[%s0] sm:$0xff]
  %v54 = vld [vmem:[%s0 + $0x8] sm:$0xff]
  %57 = vrot.lane.b32.xlu0 %v53, 127
  %v58 = vpop.permute.xlu0 %57
  %59 = vrot.lane.b32.xlu0 %v54, 127
  %v60 = vpop.permute.xlu0 %59
  %vm61 = vcmask 1039360
  %v62 = vsel %vm61, %v58, %v60
  %65 = vst [vmem:[#allocation2 + $0x20] sm:$0xff] %v62
  %66 = vst.msk [vmem:[#allocation2 + $0x28] sm:$0xff] %vm51, %v60
  %v67 = vld [vmem:[%s0] sm:$0xff]
  %v68 = vld [vmem:[%s0 + $0x8] sm:$0xff]
  %71 = vrot.lane.b32.xlu0 %v67, 126
  %v72 = vpop.permute.xlu0 %71
  %73 = vrot.lane.b32.xlu0 %v68, 126
  %v74 = vpop.permute.xlu0 %73
  %vm75 = vcmask 1031168
  %v76 = vsel %vm75, %v72, %v74
  %79 = vst [vmem:[#allocation2 + $0x40] sm:$0xff] %v76
  %80 = vst.msk [vmem:[#allocation2 + $0x48] sm:$0xff] %vm51, %v74
  %v81 = vld [vmem:[%s0] sm:$0xff]
  %v82 = vld [vmem:[%s0 + $0x8] sm:$0xff]
  %85 = vrot.lane.b32.xlu0 %v81, 112
  %v86 = vpop.permute.xlu0 %85
  %87 = vrot.lane.b32.xlu0 %v82, 112
  %v88 = vpop.permute.xlu0 %87
  %vm89 = vcmask 916480
  %v90 = vsel %vm89, %v86, %v88
  %93 = vst [vmem:[#allocation2 + $0x60] sm:$0xff] %v90
  %94 = vst.msk [vmem:[#allocation2 + $0x68] sm:$0xff] %vm51, %v88
  %v95 = vld [vmem:[%s0] sm:$0xff]
  %v96 = vld [vmem:[%s0 + $0x8] sm:$0xff]
  %99 = vrot.lane.b32.xlu0 %v95, 111
  %v100 = vpop.permute.xlu0 %99
  %101 = vrot.lane.b32.xlu0 %v96, 111
  %v102 = vpop.permute.xlu0 %101
  %vm103 = vcmask 908288
  %v104 = vsel %vm103, %v100, %v102
  %107 = vst [vmem:[#allocation2 + $0x80] sm:$0xff] %v104
  %108 = vst.msk [vmem:[#allocation2 + $0x88] sm:$0xff] %vm51, %v102
  %v109 = vld [vmem:[%s0] sm:$0xff]
  %v110 = vld [vmem:[%s0 + $0x8] sm:$0xff]
  %113 = vrot.lane.b32.xlu0 %v109, 110
  %v114 = vpop.permute.xlu0 %113
  %115 = vrot.lane.b32.xlu0 %v110, 110
  %v116 = vpop.permute.xlu0 %115
  %vm117 = vcmask 900096
  %v118 = vsel %vm117, %v114, %v116
  %121 = vst [vmem:[#allocation2 + $0xa0] sm:$0xff] %v118
  %122 = vst.msk [vmem:[#allocation2 + $0xa8] sm:$0xff] %vm51, %v116
  %v123 = vld [vmem:[%s0] sm:$0xff]
  %v124 = vld [vmem:[%s0 + $0x8] sm:$0xff]
  %127 = vrot.lane.b32.xlu0 %v123, 96
  %v128 = vpop.permute.xlu0 %127
  %129 = vrot.lane.b32.xlu0 %v124, 96
  %v130 = vpop.permute.xlu0 %129
  %vm131 = vcmask 785408
  %v132 = vsel %vm131, %v128, %v130
  %135 = vst [vmem:[#allocation2 + $0xc0] sm:$0xff] %v132
  %136 = vst.msk [vmem:[#allocation2 + $0xc8] sm:$0xff] %vm51, %v130
  %v137 = vld [vmem:[%s0] sm:$0xff]
  %v138 = vld [vmem:[%s0 + $0x8] sm:$0xff]
  %141 = vrot.lane.b32.xlu0 %v137, 95
  %v142 = vpop.permute.xlu0 %141
  %143 = vrot.lane.b32.xlu0 %v138, 95
  %v144 = vpop.permute.xlu0 %143
  %vm145 = vcmask 777216
  %v146 = vsel %vm145, %v142, %v144
  %149 = vst [vmem:[#allocation2 + $0xe0] sm:$0xff] %v146
  %150 = vst.msk [vmem:[#allocation2 + $0xe8] sm:$0xff] %vm51, %v144
  %v151 = vld [vmem:[%s0] sm:$0xff]
  %v152 = vld [vmem:[%s0 + $0x8] sm:$0xff]
  %155 = vrot.lane.b32.xlu0 %v151, 94
  %v156 = vpop.permute.xlu0 %155
  %157 = vrot.lane.b32.xlu0 %v152, 94
  %v158 = vpop.permute.xlu0 %157
  %v159 = vsel %vm51, %v156, %v158
  %162 = vst [vmem:[#allocation2 + $0x100] sm:$0xff] %v159
  %163 = vst.msk [vmem:[#allocation2 + $0x108] sm:$0xff] %vm51, %v158
  %s164 = scalar_lea.vmem %s0, 16
  %v165 = vld [vmem:[%s164] sm:$0xff]
  %v166 = vld [vmem:[%s164 + $0x8] sm:$0xff]
  %167 = vst [vmem:[#allocation2 + $0x10] sm:$0xff] %v165
  %168 = vst.msk [vmem:[#allocation2 + $0x18] sm:$0xff] %vm51, %v166
  %v169 = vld [vmem:[%s164] sm:$0xff]
  %v170 = vld [vmem:[%s164 + $0x8] sm:$0xff]
  %173 = vrot.lane.b32.xlu0 %v169, 127
  %v174 = vpop.permute.xlu0 %173
  %175 = vrot.lane.b32.xlu0 %v170, 127
  %v176 = vpop.permute.xlu0 %175
  %v177 = vsel %vm61, %v174, %v176
  %180 = vst [vmem:[#allocation2 + $0x30] sm:$0xff] %v177
  %181 = vst.msk [vmem:[#allocation2 + $0x38] sm:$0xff] %vm51, %v176
  %v182 = vld [vmem:[%s164] sm:$0xff]
  %v183 = vld [vmem:[%s164 + $0x8] sm:$0xff]
  %186 = vrot.lane.b32.xlu0 %v182, 126
  %v187 = vpop.permute.xlu0 %186
  %188 = vrot.lane.b32.xlu0 %v183, 126
  %v189 = vpop.permute.xlu0 %188
  %v190 = vsel %vm75, %v187, %v189
  %193 = vst [vmem:[#allocation2 + $0x50] sm:$0xff] %v190
  %194 = vst.msk [vmem:[#allocation2 + $0x58] sm:$0xff] %vm51, %v189
  %v195 = vld [vmem:[%s164] sm:$0xff]
  %v196 = vld [vmem:[%s164 + $0x8] sm:$0xff]
  %199 = vrot.lane.b32.xlu0 %v195, 112
  %v200 = vpop.permute.xlu0 %199
  %201 = vrot.lane.b32.xlu0 %v196, 112
  %v202 = vpop.permute.xlu0 %201
  %v203 = vsel %vm89, %v200, %v202
  %206 = vst [vmem:[#allocation2 + $0x70] sm:$0xff] %v203
  %207 = vst.msk [vmem:[#allocation2 + $0x78] sm:$0xff] %vm51, %v202
  %v208 = vld [vmem:[%s164] sm:$0xff]
  %v209 = vld [vmem:[%s164 + $0x8] sm:$0xff]
  %212 = vrot.lane.b32.xlu0 %v208, 111
  %v213 = vpop.permute.xlu0 %212
  %214 = vrot.lane.b32.xlu0 %v209, 111
  %v215 = vpop.permute.xlu0 %214
  %v216 = vsel %vm103, %v213, %v215
  %219 = vst [vmem:[#allocation2 + $0x90] sm:$0xff] %v216
  %220 = vst.msk [vmem:[#allocation2 + $0x98] sm:$0xff] %vm51, %v215
  %v221 = vld [vmem:[%s164] sm:$0xff]
  %v222 = vld [vmem:[%s164 + $0x8] sm:$0xff]
  %225 = vrot.lane.b32.xlu0 %v221, 110
  %v226 = vpop.permute.xlu0 %225
  %227 = vrot.lane.b32.xlu0 %v222, 110
  %v228 = vpop.permute.xlu0 %227
  %v229 = vsel %vm117, %v226, %v228
  %232 = vst [vmem:[#allocation2 + $0xb0] sm:$0xff] %v229
  %233 = vst.msk [vmem:[#allocation2 + $0xb8] sm:$0xff] %vm51, %v228
  %v234 = vld [vmem:[%s164] sm:$0xff]
  %v235 = vld [vmem:[%s164 + $0x8] sm:$0xff]
  %238 = vrot.lane.b32.xlu0 %v234, 96
  %v239 = vpop.permute.xlu0 %238
  %240 = vrot.lane.b32.xlu0 %v235, 96
  %v241 = vpop.permute.xlu0 %240
  %v242 = vsel %vm131, %v239, %v241
  %245 = vst [vmem:[#allocation2 + $0xd0] sm:$0xff] %v242
  %246 = vst.msk [vmem:[#allocation2 + $0xd8] sm:$0xff] %vm51, %v241
  %v247 = vld [vmem:[%s164] sm:$0xff]
  %v248 = vld [vmem:[%s164 + $0x8] sm:$0xff]
  %251 = vrot.lane.b32.xlu0 %v247, 95
  %v252 = vpop.permute.xlu0 %251
  %253 = vrot.lane.b32.xlu0 %v248, 95
  %v254 = vpop.permute.xlu0 %253
  %v255 = vsel %vm145, %v252, %v254
  %258 = vst [vmem:[#allocation2 + $0xf0] sm:$0xff] %v255
  %259 = vst.msk [vmem:[#allocation2 + $0xf8] sm:$0xff] %vm51, %v254
  %v260 = vld [vmem:[%s164] sm:$0xff]
  %v261 = vld [vmem:[%s164 + $0x8] sm:$0xff]
  %264 = vrot.lane.b32.xlu0 %v260, 94
  %v265 = vpop.permute.xlu0 %264
  %266 = vrot.lane.b32.xlu0 %v261, 94
  %v267 = vpop.permute.xlu0 %266
  %v268 = vsel %vm51, %v265, %v267
  %271 = vst [vmem:[#allocation2 + $0x110] sm:$0xff] %v268
  %272 = vst.msk [vmem:[#allocation2 + $0x118] sm:$0xff] %vm51, %v267
  %v273 = vld [vmem:[#allocation2] sm:$0xff]
  %v274 = vld [vmem:[#allocation2 + $0x8] sm:$0xff]
  %v275 = vld [vmem:[#allocation2 + $0x10] sm:$0xff]
  %v276 = vld [vmem:[#allocation2 + $0x18] sm:$0xff]
  %v277 = vld [vmem:[#allocation2 + $0x20] sm:$0xff]
  %v278 = vld [vmem:[#allocation2 + $0x28] sm:$0xff]
  %v279 = vld [vmem:[#allocation2 + $0x30] sm:$0xff]
  %v280 = vld [vmem:[#allocation2 + $0x38] sm:$0xff]
  %v281 = vld [vmem:[#allocation2 + $0x40] sm:$0xff]
  %v282 = vld [vmem:[#allocation2 + $0x48] sm:$0xff]
  %v283 = vld [vmem:[#allocation2 + $0x50] sm:$0xff]
  %v284 = vld [vmem:[#allocation2 + $0x58] sm:$0xff]
  %v285 = vld [vmem:[#allocation2 + $0x60] sm:$0xff]
  %v286 = vld [vmem:[#allocation2 + $0x68] sm:$0xff]
  %v287 = vld [vmem:[#allocation2 + $0x70] sm:$0xff]
  %v288 = vld [vmem:[#allocation2 + $0x78] sm:$0xff]
  %v289 = vld [vmem:[#allocation2 + $0x80] sm:$0xff]
  %v290 = vld [vmem:[#allocation2 + $0x88] sm:$0xff]
  %v291 = vld [vmem:[#allocation2 + $0x90] sm:$0xff]
  %v292 = vld [vmem:[#allocation2 + $0x98] sm:$0xff]
  %v293 = vld [vmem:[#allocation2 + $0xa0] sm:$0xff]
  %v294 = vld [vmem:[#allocation2 + $0xa8] sm:$0xff]
  %v295 = vld [vmem:[#allocation2 + $0xb0] sm:$0xff]
  %v296 = vld [vmem:[#allocation2 + $0xb8] sm:$0xff]
  %v297 = vld [vmem:[#allocation2 + $0xc0] sm:$0xff]
  %v298 = vld [vmem:[#allocation2 + $0xc8] sm:$0xff]
  %v299 = vld [vmem:[#allocation2 + $0xd0] sm:$0xff]
  %v300 = vld [vmem:[#allocation2 + $0xd8] sm:$0xff]
  %v301 = vld [vmem:[#allocation2 + $0xe0] sm:$0xff]
  %v302 = vld [vmem:[#allocation2 + $0xe8] sm:$0xff]
  %v303 = vld [vmem:[#allocation2 + $0xf0] sm:$0xff]
  %v304 = vld [vmem:[#allocation2 + $0xf8] sm:$0xff]
  %v305 = vld [vmem:[#allocation2 + $0x100] sm:$0xff]
  %v306 = vld [vmem:[#allocation2 + $0x108] sm:$0xff]
  %v307 = vld [vmem:[#allocation2 + $0x110] sm:$0xff]
  %v308 = vld [vmem:[#allocation2 + $0x118] sm:$0xff]
  %vm309 = vcmask 588800
  %v311 = vsel %vm309, %v11, 0
  %313 = vmatpush.msra.mxu0 0.0
  %314 = vmatpush.msra.mxu0 0.0
  %315 = vmatpush.msra.mxu0 0.0
  %316 = vmatpush.msra.mxu0 0.0
  %317 = vmatpush.msra.mxu0 0.0
  %318 = vmatpush.msra.mxu0 0.0
  %319 = vmatpush.msra.mxu0 0.0
  %320 = vmatpush.msra.mxu0 %v305
  %321 = vmatpush.msra.mxu0 %v301
  %322 = vmatpush.msra.mxu0 %v297
  %323 = vmatpush.msra.mxu0 %v293
  %324 = vmatpush.msra.mxu0 %v289
  %325 = vmatpush.msra.mxu0 %v285
  %326 = vmatpush.msra.mxu0 %v281
  %327 = vmatpush.msra.mxu0 %v277
  %328 = vmatpush.msra.mxu0 %v273
  %329 = vmatmul.f32.gmra.mxu0 %v311
  %v330 = vpop.f32.mrf.mxu0
  %v331 = vadd.f32 0.0, %v330
  %332 = vdwg.mxu0
  %333 = vmatpush.msra.mxu0 0.0
  %334 = vmatpush.msra.mxu0 0.0
  %335 = vmatpush.msra.mxu0 0.0
  %336 = vmatpush.msra.mxu0 0.0
  %337 = vmatpush.msra.mxu0 0.0
  %338 = vmatpush.msra.mxu0 0.0
  %339 = vmatpush.msra.mxu0 0.0
  %340 = vmatpush.msra.mxu0 %v306
  %341 = vmatpush.msra.mxu0 %v302
  %342 = vmatpush.msra.mxu0 %v298
  %343 = vmatpush.msra.mxu0 %v294
  %344 = vmatpush.msra.mxu0 %v290
  %345 = vmatpush.msra.mxu0 %v286
  %346 = vmatpush.msra.mxu0 %v282
  %347 = vmatpush.msra.mxu0 %v278
  %348 = vmatpush.msra.mxu0 %v274
  %349 = vmatmul.f32.gmra.mxu0 %v311
  %v350 = vpop.f32.mrf.mxu0
  %v351 = vadd.f32 0.0, %v350
  %352 = vdwg.mxu0
  %353 = vmatpush.msra.mxu0 0.0
  %354 = vmatpush.msra.mxu0 0.0
  %355 = vmatpush.msra.mxu0 0.0
  %356 = vmatpush.msra.mxu0 0.0
  %357 = vmatpush.msra.mxu0 0.0
  %358 = vmatpush.msra.mxu0 0.0
  %359 = vmatpush.msra.mxu0 0.0
  %360 = vmatpush.msra.mxu0 %v307
  %361 = vmatpush.msra.mxu0 %v303
  %362 = vmatpush.msra.mxu0 %v299
  %363 = vmatpush.msra.mxu0 %v295
  %364 = vmatpush.msra.mxu0 %v291
  %365 = vmatpush.msra.mxu0 %v287
  %366 = vmatpush.msra.mxu0 %v283
  %367 = vmatpush.msra.mxu0 %v279
  %368 = vmatpush.msra.mxu0 %v275
  %369 = vmatmul.f32.gmra.mxu0 %v311
  %v370 = vpop.f32.mrf.mxu0
  %v371 = vadd.f32 0.0, %v370
  %372 = vdwg.mxu0
  %373 = vmatpush.msra.mxu0 0.0
  %374 = vmatpush.msra.mxu0 0.0
  %375 = vmatpush.msra.mxu0 0.0
  %376 = vmatpush.msra.mxu0 0.0
  %377 = vmatpush.msra.mxu0 0.0
  %378 = vmatpush.msra.mxu0 0.0
  %379 = vmatpush.msra.mxu0 0.0
  %380 = vmatpush.msra.mxu0 %v308
  %381 = vmatpush.msra.mxu0 %v304
  %382 = vmatpush.msra.mxu0 %v300
  %383 = vmatpush.msra.mxu0 %v296
  %384 = vmatpush.msra.mxu0 %v292
  %385 = vmatpush.msra.mxu0 %v288
  %386 = vmatpush.msra.mxu0 %v284
  %387 = vmatpush.msra.mxu0 %v280
  %388 = vmatpush.msra.mxu0 %v276
  %389 = vmatmul.f32.gmra.mxu0 %v311
  %v390 = vpop.f32.mrf.mxu0
  %v391 = vadd.f32 0.0, %v390
  %392 = vdwg.mxu0
  %393 = vst [vmem:[%s2] sm:$0xff] %v331
  %394 = vst [vmem:[%s2 + $0x8] sm:$0xff] %v351
  %395 = vst [vmem:[%s2 + $0x10] sm:$0xff] %v371
  %396 = vst [vmem:[%s2 + $0x18] sm:$0xff] %v391
  // Predicated region
  $region10: #{separable_conv2d.1} parent=0 // pred_check
    _
  $region11: #{separable_conv2d.1} parent=0 // pred_check_branch
    %398 = sbr.rel (0) target = $region13
  $region12: #{separable_conv2d.1} parent=0 // pred_region
    _
  $region13: #{separable_conv2d.1} parent=0 // pred_fallthru
    _
  // Predicated region
  $region14: #{separable_conv2d.1} parent=0 // pred_check
    _
  $region15: #{separable_conv2d.1} parent=0 // pred_check_branch
    %400 = sbr.rel (0) target = $region17
  $region16: #{separable_conv2d.1} parent=0 // pred_region
    _
  $region17: #{separable_conv2d.1} parent=0 // pred_fallthru
    _

</llo_original>
